<compile_context>
chip_gen: v7x
topology: tpu7x:2x2x1
jax: 0.10.0
libtpu: 0.0.40
codegen_flags: <defaults>
</compile_context>

<pallas_src>
import functools

import jax
import jax.numpy as jnp
from jax.experimental import pallas as pl
from jax.experimental.pallas import tpu as pltpu


def _residual_kernel(x_ref, w3_ref, w1_ref, m_ref, o_ref, *, H, W):
    """One image per grid step; everything is (channels, H*W) lane-dense.

    x_ref : (C_in,  H*W)     input image, spatial flattened onto the lane axis
    w3_ref: (C_mid, 9*C_in)  3x3 weights, column order is (ky, kx, ci)
    w1_ref: (C_out, C_mid)   1x1 weights
    m_ref : (9, H*W)         border-validity masks (1.0 inside, 0.0 where the
                             shifted source pixel falls in the zero padding)
    o_ref : (C_out, H*W)     output image
    """
    n = H * W

    x = x_ref[...].astype(jnp.float32)               # (C_in, H*W)
    r = jnp.maximum(x, 0.0)                          # ReLU(x)

    # im2col via lane rotations + border masks (no padded scratch, no
    # unaligned spatial slices).  A *circular* roll is correct because every
    # position that wraps around is exactly a position the mask zeroes out.
    taps = []
    for ky in range(3):
        for kx in range(3):
            tap = ky * 3 + kx
            s = (ky - 1) * W + (kx - 1)              # flat offset of source pixel
            t = r if s == 0 else pltpu.roll(r, shift=(-s) % n, axis=1)
            taps.append(t * m_ref[tap:tap + 1, :])   # (C_in, H*W)
    patches = jnp.concatenate(taps, axis=0)          # (9*C_in, H*W)

    # 3x3 conv as ONE fused MXU matmul (contraction depth 9*C_in), then ReLU.
    # TODO(synk): for large C*H*W, chunk the H*W (lane) axis with a fixed-trip
    # fori_loop so `patches` stays bounded in vregs/VMEM.
    mid = jnp.dot(w3_ref[...].astype(jnp.float32), patches,
                  preferred_element_type=jnp.float32)          # (C_mid, H*W)
    h = jnp.maximum(mid, 0.0)

    # 1x1 conv + residual add; the store is lane-dense (last dim = H*W).
    out = jnp.dot(w1_ref[...].astype(jnp.float32), h,
                  preferred_element_type=jnp.float32)          # (C_out, H*W)
    o_ref[...] = (x + out).astype(o_ref.dtype)


@jax.jit
def residual_forward(x_nchw, w3_oihw, w1_oihw):
    """x: (N, C_in, H, W); w3: (C_mid, C_in, 3, 3); w1: (C_out, C_mid, 1, 1)."""
    N, C_in, H, W = x_nchw.shape
    C_mid = w3_oihw.shape[0]
    C_out = w1_oihw.shape[0]
    assert C_out == C_in, "residual add requires dim_hidden == in_channels"
    HW = H * W

    # Contiguous (row-major) merge only -- no NCHW<->NHWC transpose.
    x2 = x_nchw.reshape(N, C_in, HW)

    # Tiny weight repacks: (O, I, 3, 3) -> (O, ky, kx, I) -> (O, 9*I); 1x1 squeeze.
    w3f = jnp.transpose(w3_oihw, (0, 2, 3, 1)).reshape(C_mid, 9 * C_in)
    w1m = w1_oihw[:, :, 0, 0]

    # Border-validity masks for the 9 taps (compile-time constants under jit).
    yy = jnp.arange(H, dtype=jnp.int32).reshape(H, 1)
    xx = jnp.arange(W, dtype=jnp.int32).reshape(1, W)
    mrows = []
    for ky in range(3):
        for kx in range(3):
            ys = yy + (ky - 1)
            xs = xx + (kx - 1)
            valid = (ys >= 0) & (ys < H) & (xs >= 0) & (xs < W)    # (H, W)
            mrows.append(valid.reshape(1, HW))
    masks = jnp.concatenate(mrows, axis=0).astype(jnp.float32)      # (9, HW)

    kernel = functools.partial(_residual_kernel, H=H, W=W)
    out2 = pl.pallas_call(
        kernel,
        out_shape=jax.ShapeDtypeStruct((N, C_out, HW), x_nchw.dtype),
        grid_spec=pltpu.PrefetchScalarGridSpec(
            num_scalar_prefetch=0,
            grid=(N,),
            in_specs=[
                pl.BlockSpec((None, C_in, HW), lambda n: (n, 0, 0)),
                pl.BlockSpec((C_mid, 9 * C_in), lambda n: (0, 0)),
                pl.BlockSpec((C_out, C_mid), lambda n: (0, 0)),
                pl.BlockSpec((9, HW), lambda n: (0, 0)),
            ],
            out_specs=pl.BlockSpec((None, C_out, HW), lambda n: (n, 0, 0)),
        ),
        compiler_params=pltpu.CompilerParams(
            dimension_semantics=("parallel",),
            vmem_limit_bytes=32 * 1024 * 1024),
    )(x2, w3f, w1m, masks)

    # Contiguous split back to NCHW.
    return out2.reshape(N, C_out, H, W)


def _reference(x_nchw, w3_oihw, w1_oihw):
    """Pure-JAX reference matching the PyTorch module exactly (NCHW)."""
    h = jax.nn.relu(x_nchw)
    h = jax.lax.conv_general_dilated(
        h, w3_oihw, window_strides=(1, 1), padding=((1, 1), (1, 1)),
        dimension_numbers=("NCHW", "OIHW", "NCHW"))
    h = jax.nn.relu(h)
    h = jax.lax.conv_general_dilated(
        h, w1_oihw, window_strides=(1, 1), padding=((0, 0), (0, 0)),
        dimension_numbers=("NCHW", "OIHW", "NCHW"))
    return x_nchw + h


if __name__ == "__main__":
    # Small shapes consistent with the module: dim_hidden must equal
    # in_channels for the residual add (as used in VQ-VAE).
    N, C_in, H, W = 2, 4, 16, 16
    dim_hidden = C_in              # C_out
    dim_residual_hidden = 8        # C_mid

    key = jax.random.PRNGKey(0)
    k_x, k_w3, k_w1 = jax.random.split(key, 3)

    x = jax.random.normal(k_x, (N, C_in, H, W), dtype=jnp.float32)
    # Deterministic parameter init (Conv2d-style scaling), no bias per module.
    w3 = jax.random.normal(k_w3, (dim_residual_hidden, C_in, 3, 3),
                           dtype=jnp.float32) * (1.0 / (C_in * 9) ** 0.5)
    w1 = jax.random.normal(k_w1, (dim_hidden, dim_residual_hidden, 1, 1),
                           dtype=jnp.float32) * (1.0 / dim_residual_hidden ** 0.5)

    out = residual_forward(x, w3, w1)
    out = jax.block_until_ready(out)

    ref = _reference(x, w3, w1)
    assert out.shape == (N, C_in, H, W)
    assert jnp.allclose(out, ref, atol=1e-4, rtol=1e-4), "mismatch vs reference"

    print("KERNEL_OK")
</pallas_src>

<mosaic_0001>
module attributes {stable_mosaic.version = 11 : i64} {
  func.func @_residual_kernel(%arg0: i32, %arg1: memref<1x4x256xf32, #tpu.memory_space<vmem>>, %arg2: memref<8x36xf32, #tpu.memory_space<vmem>>, %arg3: memref<4x8xf32, #tpu.memory_space<vmem>>, %arg4: memref<9x256xf32, #tpu.memory_space<vmem>>, %arg5: memref<1x4x256xf32, #tpu.memory_space<vmem>>) attributes {dimension_semantics = [#tpu.dimension_semantics<parallel>], iteration_bounds = array<i64: 2>, scalar_prefetch = 0 : i64, scratch_operands = 0 : i64, tpu.core_type = #tpu.core_type<tc>, window_params = [{transform_indices = @transform_0, window_bounds = array<i64: 1, 4, 256>}, {pipeline_mode = #tpu.pipeline_mode<synchronous>, transform_indices = @transform_1, window_bounds = array<i64: 8, 36>}, {pipeline_mode = #tpu.pipeline_mode<synchronous>, transform_indices = @transform_2, window_bounds = array<i64: 4, 8>}, {pipeline_mode = #tpu.pipeline_mode<synchronous>, transform_indices = @transform_3, window_bounds = array<i64: 9, 256>}, {transform_indices = @transform_4, window_bounds = array<i64: 1, 4, 256>}]} {
    %c0 = arith.constant 0 : index
    %c0_0 = arith.constant 0 : index
    %c0_1 = arith.constant 0 : index
    %0 = vector.load %arg1[%c0, %c0_0, %c0_1] : memref<1x4x256xf32, #tpu.memory_space<vmem>>, vector<1x4x256xf32>
    %1 = vector.shape_cast %0 : vector<1x4x256xf32> to vector<4x256xf32>
    %cst = arith.constant 0.000000e+00 : f32
    %2 = vector.broadcast %cst : f32 to vector<4x256xf32>
    %3 = arith.maximumf %1, %2 : vector<4x256xf32>
    %c17_i32 = arith.constant 17 : i32
    %4 = tpu.dynamic_rotate %3 by %c17_i32 dim 1 : vector<4x256xf32>, i32 -> vector<4x256xf32>
    %c0_2 = arith.constant 0 : index
    %c0_3 = arith.constant 0 : index
    %5 = vector.load %arg4[%c0_2, %c0_3] : memref<9x256xf32, #tpu.memory_space<vmem>>, vector<1x256xf32>
    %6 = vector.broadcast %5 : vector<1x256xf32> to vector<4x256xf32>
    %7 = arith.mulf %4, %6 : vector<4x256xf32>
    %c16_i32 = arith.constant 16 : i32
    %8 = tpu.dynamic_rotate %3 by %c16_i32 dim 1 : vector<4x256xf32>, i32 -> vector<4x256xf32>
    %c1 = arith.constant 1 : index
    %c0_4 = arith.constant 0 : index
    %9 = vector.load %arg4[%c1, %c0_4] : memref<9x256xf32, #tpu.memory_space<vmem>>, vector<1x256xf32>
    %10 = vector.broadcast %9 : vector<1x256xf32> to vector<4x256xf32>
    %11 = arith.mulf %8, %10 : vector<4x256xf32>
    %c15_i32 = arith.constant 15 : i32
    %12 = tpu.dynamic_rotate %3 by %c15_i32 dim 1 : vector<4x256xf32>, i32 -> vector<4x256xf32>
    %c2 = arith.constant 2 : index
    %c0_5 = arith.constant 0 : index
    %13 = vector.load %arg4[%c2, %c0_5] : memref<9x256xf32, #tpu.memory_space<vmem>>, vector<1x256xf32>
    %14 = vector.broadcast %13 : vector<1x256xf32> to vector<4x256xf32>
    %15 = arith.mulf %12, %14 : vector<4x256xf32>
    %c1_i32 = arith.constant 1 : i32
    %16 = tpu.dynamic_rotate %3 by %c1_i32 dim 1 : vector<4x256xf32>, i32 -> vector<4x256xf32>
    %c3 = arith.constant 3 : index
    %c0_6 = arith.constant 0 : index
    %17 = vector.load %arg4[%c3, %c0_6] : memref<9x256xf32, #tpu.memory_space<vmem>>, vector<1x256xf32>
    %18 = vector.broadcast %17 : vector<1x256xf32> to vector<4x256xf32>
    %19 = arith.mulf %16, %18 : vector<4x256xf32>
    %c4 = arith.constant 4 : index
    %c0_7 = arith.constant 0 : index
    %20 = vector.load %arg4[%c4, %c0_7] : memref<9x256xf32, #tpu.memory_space<vmem>>, vector<1x256xf32>
    %21 = vector.broadcast %20 : vector<1x256xf32> to vector<4x256xf32>
    %22 = arith.mulf %3, %21 : vector<4x256xf32>
    %c255_i32 = arith.constant 255 : i32
    %23 = tpu.dynamic_rotate %3 by %c255_i32 dim 1 : vector<4x256xf32>, i32 -> vector<4x256xf32>
    %c5 = arith.constant 5 : index
    %c0_8 = arith.constant 0 : index
    %24 = vector.load %arg4[%c5, %c0_8] : memref<9x256xf32, #tpu.memory_space<vmem>>, vector<1x256xf32>
    %25 = vector.broadcast %24 : vector<1x256xf32> to vector<4x256xf32>
    %26 = arith.mulf %23, %25 : vector<4x256xf32>
    %c241_i32 = arith.constant 241 : i32
    %27 = tpu.dynamic_rotate %3 by %c241_i32 dim 1 : vector<4x256xf32>, i32 -> vector<4x256xf32>
    %c6 = arith.constant 6 : index
    %c0_9 = arith.constant 0 : index
    %28 = vector.load %arg4[%c6, %c0_9] : memref<9x256xf32, #tpu.memory_space<vmem>>, vector<1x256xf32>
    %29 = vector.broadcast %28 : vector<1x256xf32> to vector<4x256xf32>
    %30 = arith.mulf %27, %29 : vector<4x256xf32>
    %c240_i32 = arith.constant 240 : i32
    %31 = tpu.dynamic_rotate %3 by %c240_i32 dim 1 : vector<4x256xf32>, i32 -> vector<4x256xf32>
    %c7 = arith.constant 7 : index
    %c0_10 = arith.constant 0 : index
    %32 = vector.load %arg4[%c7, %c0_10] : memref<9x256xf32, #tpu.memory_space<vmem>>, vector<1x256xf32>
    %33 = vector.broadcast %32 : vector<1x256xf32> to vector<4x256xf32>
    %34 = arith.mulf %31, %33 : vector<4x256xf32>
    %c239_i32 = arith.constant 239 : i32
    %35 = tpu.dynamic_rotate %3 by %c239_i32 dim 1 : vector<4x256xf32>, i32 -> vector<4x256xf32>
    %c8 = arith.constant 8 : index
    %c0_11 = arith.constant 0 : index
    %36 = vector.load %arg4[%c8, %c0_11] : memref<9x256xf32, #tpu.memory_space<vmem>>, vector<1x256xf32>
    %37 = vector.broadcast %36 : vector<1x256xf32> to vector<4x256xf32>
    %38 = arith.mulf %35, %37 : vector<4x256xf32>
    %39 = tpu.concatenate %7, %11, %15, %19, %22, %26, %30, %34, %38 in 0 : vector<4x256xf32>, vector<4x256xf32>, vector<4x256xf32>, vector<4x256xf32>, vector<4x256xf32>, vector<4x256xf32>, vector<4x256xf32>, vector<4x256xf32>, vector<4x256xf32> -> vector<36x256xf32>
    %c0_12 = arith.constant 0 : index
    %c0_13 = arith.constant 0 : index
    %40 = vector.load %arg2[%c0_12, %c0_13] : memref<8x36xf32, #tpu.memory_space<vmem>>, vector<8x36xf32>
    %cst_14 = arith.constant dense<0.000000e+00> : vector<8x256xf32>
    %41 = tpu.matmul %40, %39, %cst_14 {dimension_numbers = #tpu.dot_dimension_numbers<[1], [0], [0], [1], [0, 0, 1, 1], [], []>} : vector<8x36xf32>, vector<36x256xf32>, vector<8x256xf32> -> vector<8x256xf32>
    %cst_15 = arith.constant 0.000000e+00 : f32
    %42 = vector.broadcast %cst_15 : f32 to vector<8x256xf32>
    %43 = arith.maximumf %41, %42 : vector<8x256xf32>
    %c0_16 = arith.constant 0 : index
    %c0_17 = arith.constant 0 : index
    %44 = vector.load %arg3[%c0_16, %c0_17] : memref<4x8xf32, #tpu.memory_space<vmem>>, vector<4x8xf32>
    %cst_18 = arith.constant dense<0.000000e+00> : vector<4x256xf32>
    %45 = tpu.matmul %44, %43, %cst_18 {dimension_numbers = #tpu.dot_dimension_numbers<[1], [0], [0], [1], [0, 0, 1, 1], [], []>} : vector<4x8xf32>, vector<8x256xf32>, vector<4x256xf32> -> vector<4x256xf32>
    %46 = arith.addf %1, %45 : vector<4x256xf32>
    %c0_19 = arith.constant 0 : index
    %c0_20 = arith.constant 0 : index
    %c0_21 = arith.constant 0 : index
    %47 = vector.load %arg5[%c0_19, %c0_20, %c0_21] : memref<1x4x256xf32, #tpu.memory_space<vmem>>, vector<1x4x256xf32>
    %48 = vector.shape_cast %47 : vector<1x4x256xf32> to vector<4x256xf32>
    %49 = vector.shape_cast %46 : vector<4x256xf32> to vector<1x4x256xf32>
    tpu.vector_store %arg5[%c0_19, %c0_20, %c0_21], %49 {strides = array<i32>} : memref<1x4x256xf32, #tpu.memory_space<vmem>>, vector<1x4x256xf32>,
    return
  }
  func.func @transform_0(%arg0: i32) -> (i32, i32, i32) {
    %c0_i32 = arith.constant 0 : i32
    %c0_i32_0 = arith.constant 0 : i32
    %c0_i32_1 = arith.constant 0 : i32
    return %arg0, %c0_i32, %c0_i32_0 : i32, i32, i32
  }
  func.func @transform_1(%arg0: i32) -> (i32, i32) {
    %c0_i32 = arith.constant 0 : i32
    %c0_i32_0 = arith.constant 0 : i32
    %c0_i32_1 = arith.constant 0 : i32
    return %c0_i32, %c0_i32_0 : i32, i32
  }
  func.func @transform_2(%arg0: i32) -> (i32, i32) {
    %c0_i32 = arith.constant 0 : i32
    %c0_i32_0 = arith.constant 0 : i32
    %c0_i32_1 = arith.constant 0 : i32
    return %c0_i32, %c0_i32_0 : i32, i32
  }
  func.func @transform_3(%arg0: i32) -> (i32, i32) {
    %c0_i32 = arith.constant 0 : i32
    %c0_i32_0 = arith.constant 0 : i32
    %c0_i32_1 = arith.constant 0 : i32
    return %c0_i32, %c0_i32_0 : i32, i32
  }
  func.func @transform_4(%arg0: i32) -> (i32, i32, i32) {
    %c0_i32 = arith.constant 0 : i32
    %c0_i32_0 = arith.constant 0 : i32
    %c0_i32_1 = arith.constant 0 : i32
    return %arg0, %c0_i32, %c0_i32_0 : i32, i32, i32
  }
}

</mosaic_0001>

<llo_original>
// kernel: residual_forward.1
$region0: #{residual_forward.1}
  #allocation0 [shape = 'u32[]', space=smem, size = 0x4, offset = 0x4, fixed_abs, tag = 'smem constant byte address 0x4 - core index']
  #allocation1 [shape = 'u32[144,128]{1,0:T(1,128)}', space=vmem, size = 0x12000, scoped, tag = 'internal scratch']
  %s0 = inlined_call_operand.vmem [shape: f32[2,4,256], index: 0, kind: input, shape index: {}]
  %s1 = inlined_call_operand.vmem [shape: f32[8,36], index: 1, kind: input, shape index: {}]
  %s2 = inlined_call_operand.vmem [shape: f32[4,8], index: 2, kind: input, shape index: {}]
  %s3 = inlined_call_operand.vmem [shape: f32[9,256], index: 3, kind: input, shape index: {}]
  %s4 = inlined_call_operand.vmem [shape: f32[2,4,256], index: 4, kind: output, shape index: {}]
  %s5 = sld [smem:[#allocation0]]
  $region49: #{residual_forward.1} parent=0
    _
  %s7 = ssub.s32 1, %s5
  %s8 = scalar_select 0, %s7, %s5
  loop: start=0, step=1, limit=4
  $region2: #{residual_forward.1} parent=0 // loop_pre_header
    _
  $region3: #{residual_forward.1} parent=0 // loop_header
    %s10 = sphi 0, %s14
    %p11 = scmp.ge.s32.totalorder %s10, 4
    %s20 = sphi 0, %s22
    %s23 = sphi 0, %s20
    %s24 = sphi 0, %s23
    %s40 = sphi 0, %s24
    %s44 = sphi 0, %s44
    %s46 = sphi 0, %s44
    %s47 = sphi 0, %s46
    %s61 = sphi 0, %s47
    %s65 = sphi 0, %s65
    %s67 = sphi 0, %s65
    %s68 = sphi 0, %s67
    %s82 = sphi 0, %s68
    %s86 = sphi 0, %s86
    %s88 = sphi 0, %s86
    %s89 = sphi 0, %s88
    %s103 = sphi 0, %s89
    %s109 = sphi 0, %s111
    %s112 = sphi 0, %s109
    %s113 = sphi 0, %s112
    %s129 = sphi 0, %s113
  $region4: #{residual_forward.1} parent=0 // loop_header_branch
    %13 = sbr.rel (%p11) target = $region8
  $region5: #{residual_forward.1} parent=0 // loop_body
    %s15 = ssub.s32 %s10, 1
    %s16 = ssub.s32 %s10, 2
    %s17 = sadd.s32 %s10, 1
    %s18 = ssub.s32 %s10, %s17
    %p19 = scmp.eq.s32.totalorder %s18, 0
    %s21 = sadd.s32 %s20, 1
    %s22 = scalar_select %p19, %s20, %s21
    %p25 = pneg %p19
    %p26 = scmp.eq.s32.totalorder %s10, 1
    %p27 = por %p25, %p26
    %p28 = scmp.ne.s32.totalorder %s20, %s23
    %p29 = scmp.eq.s32.totalorder %s10, 0
    %p30 = por %p28, %p29
    %p31 = scmp.ne.s32.totalorder %s20, %s23
    %p32 = scmp.eq.s32.totalorder %s15, 1
    %p33 = por %p31, %p32
    %p34 = scmp.ne.s32.totalorder %s23, %s24
    %p35 = scmp.eq.s32.totalorder %s15, 0
    %p36 = por %p34, %p35
    %p37 = scmp.ne.s32.totalorder %s23, %s24
    %p38 = scmp.eq.s32.totalorder %s16, 1
    %p39 = por %p37, %p38
    %p41 = scmp.ne.s32.totalorder %s24, %s40
    %p42 = scmp.eq.s32.totalorder %s16, 0
    %p43 = por %p41, %p42
    %s45 = sadd.s32 %s44, 1
    %p48 = scmp.eq.s32.totalorder %s10, 1
    %p49 = scmp.ne.s32.totalorder %s44, %s46
    %p50 = scmp.eq.s32.totalorder %s10, 0
    %p51 = por %p49, %p50
    %p52 = scmp.ne.s32.totalorder %s44, %s46
    %p53 = scmp.eq.s32.totalorder %s15, 1
    %p54 = por %p52, %p53
    %p55 = scmp.ne.s32.totalorder %s46, %s47
    %p56 = scmp.eq.s32.totalorder %s15, 0
    %p57 = por %p55, %p56
    %p58 = scmp.ne.s32.totalorder %s46, %s47
    %p59 = scmp.eq.s32.totalorder %s16, 1
    %p60 = por %p58, %p59
    %p62 = scmp.ne.s32.totalorder %s47, %s61
    %p63 = scmp.eq.s32.totalorder %s16, 0
    %p64 = por %p62, %p63
    %s66 = sadd.s32 %s65, 1
    %p69 = scmp.eq.s32.totalorder %s10, 1
    %p70 = scmp.ne.s32.totalorder %s65, %s67
    %p71 = scmp.eq.s32.totalorder %s10, 0
    %p72 = por %p70, %p71
    %p73 = scmp.ne.s32.totalorder %s65, %s67
    %p74 = scmp.eq.s32.totalorder %s15, 1
    %p75 = por %p73, %p74
    %p76 = scmp.ne.s32.totalorder %s67, %s68
    %p77 = scmp.eq.s32.totalorder %s15, 0
    %p78 = por %p76, %p77
    %p79 = scmp.ne.s32.totalorder %s67, %s68
    %p80 = scmp.eq.s32.totalorder %s16, 1
    %p81 = por %p79, %p80
    %p83 = scmp.ne.s32.totalorder %s68, %s82
    %p84 = scmp.eq.s32.totalorder %s16, 0
    %p85 = por %p83, %p84
    %s87 = sadd.s32 %s86, 1
    %p90 = scmp.eq.s32.totalorder %s10, 1
    %p91 = scmp.ne.s32.totalorder %s86, %s88
    %p92 = scmp.eq.s32.totalorder %s10, 0
    %p93 = por %p91, %p92
    %p94 = scmp.ne.s32.totalorder %s86, %s88
    %p95 = scmp.eq.s32.totalorder %s15, 1
    %p96 = por %p94, %p95
    %p97 = scmp.ne.s32.totalorder %s88, %s89
    %p98 = scmp.eq.s32.totalorder %s15, 0
    %p99 = por %p97, %p98
    %p100 = scmp.ne.s32.totalorder %s88, %s89
    %p101 = scmp.eq.s32.totalorder %s16, 1
    %p102 = por %p100, %p101
    %p104 = scmp.ne.s32.totalorder %s89, %s103
    %p105 = scmp.eq.s32.totalorder %s16, 0
    %p106 = por %p104, %p105
    %s107 = ssub.s32 %s10, %s17
    %p108 = scmp.eq.s32.totalorder %s107, 0
    %s110 = sadd.s32 %s109, 1
    %s111 = scalar_select %p108, %s109, %s110
    %p114 = pneg %p108
    %p115 = scmp.eq.s32.totalorder %s10, 1
    %p116 = por %p114, %p115
    %p117 = scmp.ne.s32.totalorder %s109, %s112
    %p118 = scmp.eq.s32.totalorder %s10, 0
    %p119 = por %p117, %p118
    %p120 = scmp.ne.s32.totalorder %s109, %s112
    %p121 = scmp.eq.s32.totalorder %s15, 1
    %p122 = por %p120, %p121
    %p123 = scmp.ne.s32.totalorder %s112, %s113
    %p124 = scmp.eq.s32.totalorder %s15, 0
    %p125 = por %p123, %p124
    %p126 = scmp.ne.s32.totalorder %s112, %s113
    %p127 = scmp.eq.s32.totalorder %s16, 1
    %p128 = por %p126, %p127
    %p130 = scmp.ne.s32.totalorder %s113, %s129
    %p131 = scmp.eq.s32.totalorder %s16, 0
    %p132 = por %p130, %p131
    %p133 = scmp.le.s32.totalorder 1, %s10
    %p134 = scmp.lt.s32.totalorder %s10, 3
    %p135 = pnand %p133, %p134
    %p136 = pneg %p135
    // Predicated region
    $region9: #{residual_forward.1} parent=5 // pred_check
      _
    $region10: #{residual_forward.1} parent=5 // pred_check_branch
      %138 = sbr.rel (%p135) target = $region12
    $region11: #{residual_forward.1} parent=5 // pred_region
      %s139 = ssub.s32 %s10, 1
      // Predicated region
      $region13: #{residual_forward.1} parent=11 // pred_check
        %p140 = pneg %p57
      $region14: #{residual_forward.1} parent=11 // pred_check_branch
        %142 = sbr.rel (%p140) target = $region16
      $region15: #{residual_forward.1} parent=11 // pred_region
        _
      $region16: #{residual_forward.1} parent=11 // pred_fallthru
        _
      // Predicated region
      $region17: #{residual_forward.1} parent=11 // pred_check
        %p143 = pneg %p78
      $region18: #{residual_forward.1} parent=11 // pred_check_branch
        %145 = sbr.rel (%p143) target = $region20
      $region19: #{residual_forward.1} parent=11 // pred_region
        _
      $region20: #{residual_forward.1} parent=11 // pred_fallthru
        _
      // Predicated region
      $region21: #{residual_forward.1} parent=11 // pred_check
        %p146 = pneg %p99
      $region22: #{residual_forward.1} parent=11 // pred_check_branch
        %148 = sbr.rel (%p146) target = $region24
      $region23: #{residual_forward.1} parent=11 // pred_region
        _
      $region24: #{residual_forward.1} parent=11 // pred_fallthru
        _
    $region12: #{residual_forward.1} parent=5 // pred_fallthru
      _
    %p149 = scmp.lt.s32.totalorder %s10, 2
    // Predicated region
    $region25: #{residual_forward.1} parent=5 // pred_check
      %p150 = pneg %p149
    $region26: #{residual_forward.1} parent=5 // pred_check_branch
      %152 = sbr.rel (%p150) target = $region28
    $region27: #{residual_forward.1} parent=5 // pred_region
      // Predicated region
      $region29: #{residual_forward.1} parent=27 // pred_check
        %p153 = pneg %p30
      $region30: #{residual_forward.1} parent=27 // pred_check_branch
        %155 = sbr.rel (%p153) target = $region32
      $region31: #{residual_forward.1} parent=27 // pred_region
        %p156 = scmp.lt.s32.totalorder %s10, 1
        %s157 = scalar_select %p156, %s10, 1
        %s158 = smul.addr %s157, 2
        %s159 = smul.addr %s158, 4
        %s160 = scalar_lea.vmem %s0, %s159
      $region32: #{residual_forward.1} parent=27 // pred_fallthru
        _
    $region28: #{residual_forward.1} parent=5 // pred_fallthru
      _
    %p161 = scmp.le.s32.totalorder 1, %s10
    %p162 = scmp.lt.s32.totalorder %s10, 3
    %p163 = pnand %p161, %p162
    %p164 = pneg %p163
    // Predicated region
    $region33: #{residual_forward.1} parent=5 // pred_check
      _
    $region34: #{residual_forward.1} parent=5 // pred_check_branch
      %166 = sbr.rel (%p163) target = $region36
    $region35: #{residual_forward.1} parent=5 // pred_region
      %s167 = ssub.s32 %s10, 1
      %p168 = scmp.lt.s32.totalorder %s15, 1
      %s169 = scalar_select %p168, %s15, 1
      %s170 = smul.addr %s169, 2
      %s171 = smul.addr %s170, 4
      %s172 = scalar_lea.vmem %s0, %s171
      %p173 = pneg %p36
      %p174 = pneg %p33
      %p175 = pneg %p57
      %p176 = pneg %p54
      %p177 = pneg %p78
      %p178 = pneg %p75
      %p179 = pneg %p99
      %p180 = pneg %p96
      %p181 = pneg %p125
      %p182 = pneg %p122
      %p183 = scmp.lt.s32.totalorder %s15, 1
      %s184 = scalar_select %p183, %s15, 1
      %s185 = smul.addr %s184, 2
      %s186 = smul.addr %s185, 4
      %s187 = scalar_lea.vmem %s4, %s186
      %p188 = scmp.lt.s32.totalorder %s15, 1
      %s189 = scalar_select %p188, %s15, 1
      %s190 = smul.addr %s189, 2
      %s191 = smul.addr %s190, 4
      %s192 = scalar_lea.vmem %s0, %s191
      %p193 = scmp.lt.s32.totalorder %s15, 1
      %s194 = scalar_select %p193, %s15, 1
      %s195 = smul.addr %s194, 2
      %s196 = smul.addr %s195, 4
      %s197 = scalar_lea.vmem %s4, %s196
      %v198 = vld [vmem:[%s192] sm:$0xff]
      %v199 = vmax.f32 %v198, 0.0
      %v201 = vcombine.high %v199, %v199
      %203 = vrot.lane.b32.xlu0 %v199, 17
      %v204 = vpop.permute.xlu0 %203
      %205 = vrot.lane.b32.xlu0 %v201, 17
      %v206 = vpop.permute.xlu0 %205
      %v207 = vlaneseq
      %v208 = vand.u32 %v207, 127
      %vm209 = vcmp.lt.s32.totalorder %v208, 17
      %v210 = vsel %vm209, %v204, %v206
      %v211 = vsel %vm209, %v206, %v204
      %v212 = vld [vmem:[%s3] ss:$8 sm:$0x3]
      %v214 = vlaneseq
      %v215 = vshrl.u32 %v214, 7
      %v216 = vsub.s32 0, %v215
      %v217 = vrot.slane %v212, %v216
      %v218 = vlaneseq
      %v219 = vshrl.u32 %v218, 7
      %v220 = vsub.s32 1, %v219
      %v221 = vrot.slane %v212, %v220
      %v224 = vmul.f32 %v211, %v217
      %v225 = vmul.f32 %v210, %v221
      %226 = vrot.lane.b32.xlu0 %v199, 16
      %v227 = vpop.permute.xlu0 %226
      %228 = vrot.lane.b32.xlu0 %v201, 16
      %v229 = vpop.permute.xlu0 %228
      %vm230 = vcmp.lt.s32.totalorder %v208, 16
      %v231 = vsel %vm230, %v227, %v229
      %v232 = vsel %vm230, %v229, %v227
      %s233 = scalar_lea.vmem %s3, 1
      %v234 = vld [vmem:[%s233] ss:$8 sm:$0x3]
      %v236 = vlaneseq
      %v237 = vshrl.u32 %v236, 7
      %v238 = vsub.s32 0, %v237
      %v239 = vrot.slane %v234, %v238
      %v240 = vlaneseq
      %v241 = vshrl.u32 %v240, 7
      %v242 = vsub.s32 1, %v241
      %v243 = vrot.slane %v234, %v242
      %v246 = vmul.f32 %v232, %v239
      %v247 = vmul.f32 %v231, %v243
      %248 = vrot.lane.b32.xlu0 %v199, 15
      %v249 = vpop.permute.xlu0 %248
      %250 = vrot.lane.b32.xlu0 %v201, 15
      %v251 = vpop.permute.xlu0 %250
      %vm252 = vcmp.lt.s32.totalorder %v208, 15
      %v253 = vsel %vm252, %v249, %v251
      %v254 = vsel %vm252, %v251, %v249
      %s255 = scalar_lea.vmem %s3, 2
      %v256 = vld [vmem:[%s255] ss:$8 sm:$0x3]
      %v258 = vlaneseq
      %v259 = vshrl.u32 %v258, 7
      %v260 = vsub.s32 0, %v259
      %v261 = vrot.slane %v256, %v260
      %v262 = vlaneseq
      %v263 = vshrl.u32 %v262, 7
      %v264 = vsub.s32 1, %v263
      %v265 = vrot.slane %v256, %v264
      %v268 = vmul.f32 %v254, %v261
      %v269 = vmul.f32 %v253, %v265
      %270 = vrot.lane.b32.xlu0 %v199, 1
      %v271 = vpop.permute.xlu0 %270
      %272 = vrot.lane.b32.xlu0 %v201, 1
      %v273 = vpop.permute.xlu0 %272
      %vm274 = vcmp.lt.s32.totalorder %v208, 1
      %v275 = vsel %vm274, %v271, %v273
      %v276 = vsel %vm274, %v273, %v271
      %s277 = scalar_lea.vmem %s3, 3
      %v278 = vld [vmem:[%s277] ss:$8 sm:$0x3]
      %v280 = vlaneseq
      %v281 = vshrl.u32 %v280, 7
      %v282 = vsub.s32 0, %v281
      %v283 = vrot.slane %v278, %v282
      %v284 = vlaneseq
      %v285 = vshrl.u32 %v284, 7
      %v286 = vsub.s32 1, %v285
      %v287 = vrot.slane %v278, %v286
      %v290 = vmul.f32 %v276, %v283
      %v291 = vmul.f32 %v275, %v287
      %s292 = scalar_lea.vmem %s3, 4
      %v293 = vld [vmem:[%s292] ss:$8 sm:$0x3]
      %v295 = vlaneseq
      %v296 = vshrl.u32 %v295, 7
      %v297 = vsub.s32 0, %v296
      %v298 = vrot.slane %v293, %v297
      %v299 = vlaneseq
      %v300 = vshrl.u32 %v299, 7
      %v301 = vsub.s32 1, %v300
      %v302 = vrot.slane %v293, %v301
      %v303 = vcombine.low %v298, %v302
      %v305 = vmul.f32 %v199, %v303
      %306 = vrot.lane.b32.xlu0 %v199, 127
      %v307 = vpop.permute.xlu0 %306
      %308 = vrot.lane.b32.xlu0 %v201, 127
      %v309 = vpop.permute.xlu0 %308
      %vm310 = vcmp.lt.s32.totalorder %v208, 127
      %v311 = vsel %vm310, %v307, %v309
      %v312 = vsel %vm310, %v309, %v307
      %s313 = scalar_lea.vmem %s3, 5
      %v314 = vld [vmem:[%s313] ss:$8 sm:$0x3]
      %v316 = vlaneseq
      %v317 = vshrl.u32 %v316, 7
      %v318 = vsub.s32 0, %v317
      %v319 = vrot.slane %v314, %v318
      %v320 = vlaneseq
      %v321 = vshrl.u32 %v320, 7
      %v322 = vsub.s32 1, %v321
      %v323 = vrot.slane %v314, %v322
      %v326 = vmul.f32 %v311, %v319
      %v327 = vmul.f32 %v312, %v323
      %328 = vrot.lane.b32.xlu0 %v199, 113
      %v329 = vpop.permute.xlu0 %328
      %330 = vrot.lane.b32.xlu0 %v201, 113
      %v331 = vpop.permute.xlu0 %330
      %vm332 = vcmp.lt.s32.totalorder %v208, 113
      %v333 = vsel %vm332, %v329, %v331
      %v334 = vsel %vm332, %v331, %v329
      %s335 = scalar_lea.vmem %s3, 6
      %v336 = vld [vmem:[%s335] ss:$8 sm:$0x3]
      %v338 = vlaneseq
      %v339 = vshrl.u32 %v338, 7
      %v340 = vsub.s32 0, %v339
      %v341 = vrot.slane %v336, %v340
      %v342 = vlaneseq
      %v343 = vshrl.u32 %v342, 7
      %v344 = vsub.s32 1, %v343
      %v345 = vrot.slane %v336, %v344
      %v348 = vmul.f32 %v333, %v341
      %v349 = vmul.f32 %v334, %v345
      %350 = vrot.lane.b32.xlu0 %v199, 112
      %v351 = vpop.permute.xlu0 %350
      %352 = vrot.lane.b32.xlu0 %v201, 112
      %v353 = vpop.permute.xlu0 %352
      %vm354 = vcmp.lt.s32.totalorder %v208, 112
      %v355 = vsel %vm354, %v351, %v353
      %v356 = vsel %vm354, %v353, %v351
      %s357 = scalar_lea.vmem %s3, 7
      %v358 = vld [vmem:[%s357] ss:$8 sm:$0x3]
      %v360 = vlaneseq
      %v361 = vshrl.u32 %v360, 7
      %v362 = vsub.s32 0, %v361
      %v363 = vrot.slane %v358, %v362
      %v364 = vlaneseq
      %v365 = vshrl.u32 %v364, 7
      %v366 = vsub.s32 1, %v365
      %v367 = vrot.slane %v358, %v366
      %v370 = vmul.f32 %v355, %v363
      %v371 = vmul.f32 %v356, %v367
      %372 = vrot.lane.b32.xlu0 %v199, 111
      %v373 = vpop.permute.xlu0 %372
      %374 = vrot.lane.b32.xlu0 %v201, 111
      %v375 = vpop.permute.xlu0 %374
      %vm376 = vcmp.lt.s32.totalorder %v208, 111
      %v377 = vsel %vm376, %v373, %v375
      %v378 = vsel %vm376, %v375, %v373
      %s379 = scalar_lea.vmem %s3, 16
      %v380 = vld [vmem:[%s379] ss:$8 sm:$0x3]
      %v382 = vlaneseq
      %v383 = vshrl.u32 %v382, 7
      %v384 = vsub.s32 0, %v383
      %v385 = vrot.slane %v380, %v384
      %v386 = vlaneseq
      %v387 = vshrl.u32 %v386, 7
      %v388 = vsub.s32 1, %v387
      %v389 = vrot.slane %v380, %v388
      %v392 = vmul.f32 %v377, %v385
      %v393 = vmul.f32 %v378, %v389
      %v396 = vrot.slane %v246, 4
      %v397 = vrot.slane %v247, 4
      %v402 = vrot.slane %v290, 4
      %v403 = vrot.slane %v291, 4
      %v407 = vcombine.high %v305, %v305
      %v411 = vrot.slane %v326, 4
      %v412 = vrot.slane %v327, 4
      %v417 = vrot.slane %v370, 4
      %v418 = vrot.slane %v371, 4
      %vm421 = vcmask 1043456
      %v422 = vsel %vm421, %v224, %v396
      %v423 = vsel %vm421, %v225, %v397
      %v424 = vsel %vm421, %v268, %v402
      %v425 = vsel %vm421, %v269, %v403
      %v426 = vsel %vm421, %v305, %v411
      %v427 = vsel %vm421, %v407, %v412
      %v428 = vsel %vm421, %v348, %v417
      %v429 = vsel %vm421, %v349, %v418
      %v430 = vld [vmem:[%s1] sm:$0xff]
      %vm431 = vcmask 293888
      %v433 = vsel %vm431, %v430, 0
      %v436 = vsel %vm421, %v392, 0
      %v439 = vsel %vm421, %v393, 0
      %441 = vmatprep.subr.mxu0 %v423
      %442 = vmatpush1.msra.mxu0 %v422
      %443 = vmatprep.subr.mxu0 %v425
      %444 = vmatpush1.msra.mxu0 %v424
      %445 = vmatprep.subr.mxu0 %v427
      %446 = vmatpush1.msra.mxu0 %v426
      %447 = vmatprep.subr.mxu0 %v429
      %448 = vmatpush1.msra.mxu0 %v428
      %449 = vmatprep.subr.mxu0 %v439
      %450 = vmatpush1.msra.mxu0 %v436
      %451 = vmatprep.subr.mxu0 0.0
      %452 = vmatpush1.msra.mxu0 0.0
      %453 = vmatprep.subr.mxu0 0.0
      %454 = vmatpush1.msra.mxu0 0.0
      %455 = vmatprep.subr.mxu0 0.0
      %456 = vmatpush1.msra.mxu0 0.0
      %457 = vmatprep.subr.mxu0 0.0
      %458 = vmatpush1.msra.mxu0 0.0
      %459 = vmatprep.subr.mxu0 0.0
      %460 = vmatpush1.msra.mxu0 0.0
      %461 = vmatprep.subr.mxu0 0.0
      %462 = vmatpush1.msra.mxu0 0.0
      %463 = vmatprep.subr.mxu0 0.0
      %464 = vmatpush1.msra.mxu0 0.0
      %465 = vmatprep.subr.mxu0 0.0
      %466 = vmatpush1.msra.mxu0 0.0
      %467 = vmatprep.subr.mxu0 0.0
      %468 = vmatpush1.msra.mxu0 0.0
      %469 = vmatprep.subr.mxu0 0.0
      %470 = vmatpush1.msra.mxu0 0.0
      %471 = vmatprep.subr.mxu0 0.0
      %472 = vmatpush1.msra.mxu0 0.0
      %473 = vmatprep.subr.mxu0 0.0
      %474 = vmatpush1.msra.mxu0 0.0
      %475 = vmatprep.subr.mxu0 0.0
      %476 = vmatpush1.msra.mxu0 0.0
      %477 = vmatprep.subr.mxu0 0.0
      %478 = vmatpush1.msra.mxu0 0.0
      %479 = vmatprep.subr.mxu0 0.0
      %480 = vmatpush1.msra.mxu0 0.0
      %481 = vmatprep.subr.mxu0 0.0
      %482 = vmatpush1.msra.mxu0 0.0
      %483 = vmatprep.subr.mxu0 0.0
      %484 = vmatpush1.msra.mxu0 0.0
      %485 = vmatprep.subr.mxu0 0.0
      %486 = vmatpush1.msra.mxu0 0.0
      %487 = vmatprep.subr.mxu0 0.0
      %488 = vmatpush1.msra.mxu0 0.0
      %489 = vmatprep.subr.mxu0 0.0
      %490 = vmatpush1.msra.mxu0 0.0
      %491 = vmatprep.subr.mxu0 0.0
      %492 = vmatpush1.msra.mxu0 0.0
      %493 = vmatprep.subr.mxu0 0.0
      %494 = vmatpush1.msra.mxu0 0.0
      %495 = vmatprep.subr.mxu0 0.0
      %496 = vmatpush1.msra.mxu0 0.0
      %497 = vmatprep.subr.mxu0 0.0
      %498 = vmatpush1.msra.mxu0 0.0
      %499 = vmatprep.subr.mxu0 0.0
      %500 = vmatpush1.msra.mxu0 0.0
      %501 = vmatprep.subr.mxu0 0.0
      %502 = vmatpush1.msra.mxu0 0.0
      %503 = vmatprep.subr.mxu0 0.0
      %504 = vmatpush1.msra.mxu0 0.0
      %505 = vmatprep.mubr.f32.mxu0 0.0
      %506 = vmatmul.mubr.f32.gmra.mrb[0].mxu0 %v433
      %v507 = vpop.f32.mrb[0].mxu0
      %v508 = vadd.f32 0.0, %v507
      %v509 = vpop.f32.mrb[0].mxu0
      %v510 = vadd.f32 0.0, %v509
      %511 = vdwg.mxu0
      %v512 = vmax.f32 %v508, 0.0
      %v513 = vmax.f32 %v510, 0.0
      %v514 = vld [vmem:[%s2] sm:$0xf]
      %vm515 = vcmask 64512
      %v517 = vsel %vm515, %v514, 0
      %519 = vmatprep.subr.mxu0 %v513
      %520 = vmatpush1.msra.mxu0 %v512
      %521 = vmatprep.subr.mxu0 0.0
      %522 = vmatpush1.msra.mxu0 0.0
      %523 = vmatprep.subr.mxu0 0.0
      %524 = vmatpush1.msra.mxu0 0.0
      %525 = vmatprep.subr.mxu0 0.0
      %526 = vmatpush1.msra.mxu0 0.0
      %527 = vmatprep.subr.mxu0 0.0
      %528 = vmatpush1.msra.mxu0 0.0
      %529 = vmatprep.subr.mxu0 0.0
      %530 = vmatpush1.msra.mxu0 0.0
      %531 = vmatprep.subr.mxu0 0.0
      %532 = vmatpush1.msra.mxu0 0.0
      %533 = vmatprep.subr.mxu0 0.0
      %534 = vmatpush1.msra.mxu0 0.0
      %535 = vmatprep.subr.mxu0 0.0
      %536 = vmatpush1.msra.mxu0 0.0
      %537 = vmatprep.subr.mxu0 0.0
      %538 = vmatpush1.msra.mxu0 0.0
      %539 = vmatprep.subr.mxu0 0.0
      %540 = vmatpush1.msra.mxu0 0.0
      %541 = vmatprep.subr.mxu0 0.0
      %542 = vmatpush1.msra.mxu0 0.0
      %543 = vmatprep.subr.mxu0 0.0
      %544 = vmatpush1.msra.mxu0 0.0
      %545 = vmatprep.subr.mxu0 0.0
      %546 = vmatpush1.msra.mxu0 0.0
      %547 = vmatprep.subr.mxu0 0.0
      %548 = vmatpush1.msra.mxu0 0.0
      %549 = vmatprep.subr.mxu0 0.0
      %550 = vmatpush1.msra.mxu0 0.0
      %551 = vmatprep.subr.mxu0 0.0
      %552 = vmatpush1.msra.mxu0 0.0
      %553 = vmatprep.subr.mxu0 0.0
      %554 = vmatpush1.msra.mxu0 0.0
      %555 = vmatprep.subr.mxu0 0.0
      %556 = vmatpush1.msra.mxu0 0.0
      %557 = vmatprep.subr.mxu0 0.0
      %558 = vmatpush1.msra.mxu0 0.0
      %559 = vmatprep.subr.mxu0 0.0
      %560 = vmatpush1.msra.mxu0 0.0
      %561 = vmatprep.subr.mxu0 0.0
      %562 = vmatpush1.msra.mxu0 0.0
      %563 = vmatprep.subr.mxu0 0.0
      %564 = vmatpush1.msra.mxu0 0.0
      %565 = vmatprep.subr.mxu0 0.0
      %566 = vmatpush1.msra.mxu0 0.0
      %567 = vmatprep.subr.mxu0 0.0
      %568 = vmatpush1.msra.mxu0 0.0
      %569 = vmatprep.subr.mxu0 0.0
      %570 = vmatpush1.msra.mxu0 0.0
      %571 = vmatprep.subr.mxu0 0.0
      %572 = vmatpush1.msra.mxu0 0.0
      %573 = vmatprep.subr.mxu0 0.0
      %574 = vmatpush1.msra.mxu0 0.0
      %575 = vmatprep.subr.mxu0 0.0
      %576 = vmatpush1.msra.mxu0 0.0
      %577 = vmatprep.subr.mxu0 0.0
      %578 = vmatpush1.msra.mxu0 0.0
      %579 = vmatprep.subr.mxu0 0.0
      %580 = vmatpush1.msra.mxu0 0.0
      %581 = vmatprep.subr.mxu0 0.0
      %582 = vmatpush1.msra.mxu0 0.0
      %583 = vmatprep.mubr.f32.mxu0 0.0
      %584 = vmatmul.mubr.f32.gmra.mrb[0].mxu0 %v517
      %v585 = vpop.f32.mrb[0].mxu0
      %v586 = vadd.f32 0.0, %v585
      %v587 = vpop.f32.mrb[0].mxu0
      %v588 = vadd.f32 0.0, %v587
      %589 = vdwg.mxu0
      %v592 = vcombine.low %v586, %v588
      %v594 = vadd.f32 %v198, %v592
      %595 = vst [vmem:[%s197] sm:$0xff] %v594
      %p596 = scmp.lt.s32.totalorder %s15, 1
      %s597 = scalar_select %p596, %s15, 1
      %s598 = smul.addr %s597, 2
      %s599 = smul.addr %s598, 4
      %s600 = scalar_lea.vmem %s4, %s599
      // Predicated region
      $region37: #{residual_forward.1} parent=35 // pred_check
        %p601 = pneg %p122
      $region38: #{residual_forward.1} parent=35 // pred_check_branch
        %603 = sbr.rel (%p601) target = $region40
      $region39: #{residual_forward.1} parent=35 // pred_region
        _
      $region40: #{residual_forward.1} parent=35 // pred_fallthru
        _
    $region36: #{residual_forward.1} parent=5 // pred_fallthru
      _
    %p604 = scmp.le.s32.totalorder 2, %s10
    // Predicated region
    $region41: #{residual_forward.1} parent=5 // pred_check
      %p605 = pneg %p604
    $region42: #{residual_forward.1} parent=5 // pred_check_branch
      %607 = sbr.rel (%p605) target = $region44
    $region43: #{residual_forward.1} parent=5 // pred_region
      %s608 = ssub.s32 %s10, 2
      // Predicated region
      $region45: #{residual_forward.1} parent=43 // pred_check
        %p609 = pneg %p128
      $region46: #{residual_forward.1} parent=43 // pred_check_branch
        %611 = sbr.rel (%p609) target = $region48
      $region47: #{residual_forward.1} parent=43 // pred_region
        %p612 = scmp.lt.s32.totalorder %s16, 1
        %s613 = scalar_select %p612, %s16, 1
        %s614 = smul.addr %s613, 2
        %s615 = smul.addr %s614, 4
        %s616 = scalar_lea.vmem %s4, %s615
      $region48: #{residual_forward.1} parent=43 // pred_fallthru
        _
    $region44: #{residual_forward.1} parent=5 // pred_fallthru
      _
  $region6: #{residual_forward.1} parent=0 // loop_footer
    %s14 = sadd.s32 1, %s10
  $region7: #{residual_forward.1} parent=0 // loop_footer_branch
    %9 = sbr.rel target = $region3
  $region8: #{residual_forward.1} parent=0 // loop_exit
    _

</llo_original>
